<compile_context>
chip_gen: v5e
topology: v5e:2x2
jax: 0.10.0
libtpu: 0.0.40
codegen_flags: <defaults>
</compile_context>

<pallas_src>
import functools

import jax
import jax.numpy as jnp
from jax.experimental import pallas as pl
from jax.experimental.pallas import tpu as pltpu

_LANE = 128                                 # lane width of a vreg
_TARGET_BLOCK_BYTES = 4 * 1024 * 1024       # ~4 MiB blocks per buffer
_VMEM_LIMIT = 32 * 1024 * 1024              # fits double-buffered in+out everywhere
_MIN_GRID = 4                               # let v7x's 2 TCs split the parallel axis


def _sublanes_for(dtype) -> int:
    # Full-vreg packing: 8 sublanes for 4-byte, 16 for 2-byte, 32 for 1-byte.
    return max(8, 32 // jnp.dtype(dtype).itemsize)


def _binary_projection_kernel(s_ref, x_ref, o_ref, *, threshold: float, compute_dtype):
    # s_ref: (3,) float32 in SMEM -> [t_bny, tanh(t*thr), 1/den]
    # x_ref/o_ref: lane-dense tiles in VMEM
    cdt = compute_dtype
    t = s_ref[0].astype(cdt)
    tanh_t_thr = s_ref[1].astype(cdt)
    inv_den = s_ref[2].astype(cdt)
    thr = jnp.asarray(threshold, dtype=cdt)
    x = x_ref[...].astype(cdt)
    y = (jnp.tanh(t * (x - thr)) + tanh_t_thr) * inv_den
    o_ref[...] = y.astype(o_ref.dtype)


def binary_projection(x: jax.Array, t_bny: float, threshold: float = 0.05,
                      *, donate_input: bool = False) -> jax.Array:
    """Pallas implementation of BinaryProjectionLayer.forward(x, t_bny)."""
    orig_shape = x.shape
    dtype = x.dtype
    flat = x.reshape(-1)
    n = flat.shape[0]
    if n == 0:
        return x

    # Hoisted loop-invariant scalars (computed once).
    t = jnp.float32(t_bny)
    thr_f = jnp.float32(threshold)
    tanh_t_thr = jnp.tanh(t * thr_f)
    inv_den = jnp.float32(1.0) / (tanh_t_thr + jnp.tanh(t * (jnp.float32(1.0) - thr_f)))

    if n % _LANE != 0:
        # Ragged sizes: the fused XLA elementwise loop is already at HBM roofline
        # and needs no pad/concat extra passes (cheaper than bulk-kernel + concat).
        y = (jnp.tanh(t * (flat.astype(jnp.float32) - thr_f)) + tanh_t_thr) * inv_den
        return y.astype(dtype).reshape(orig_shape)

    # ---- zero-copy streaming Pallas path (n is a multiple of 128) ----
    scalars = jnp.stack([t, tanh_t_thr, inv_den]).astype(jnp.float32)
    compute_dtype = jnp.bfloat16 if dtype == jnp.bfloat16 else jnp.float32

    # Widest lane-dense slab that divides n exactly (no padding, no extra copies).
    lanes = _LANE
    for w in (1024, 512, 256):
        if n % w == 0:
            lanes = w
            break
    rows = n // lanes
    x2d = flat.reshape(rows, lanes)

    sub = _sublanes_for(dtype)
    itemsize = jnp.dtype(dtype).itemsize
    target_rows = max(sub, (_TARGET_BLOCK_BYTES // (lanes * itemsize)) // sub * sub)
    if rows <= sub:
        # Tiny input: one block spanning the full (unaligned) row dimension.
        block_rows = rows
    else:
        # Keep blocks ~4 MiB, but split into >= _MIN_GRID steps when possible so
        # the "parallel" grid axis can be sharded across v7x's two TensorCores.
        block_rows = min(target_rows, max(sub, (rows // _MIN_GRID) // sub * sub))
    grid = (pl.cdiv(rows, block_rows),)

    cost = pl.CostEstimate(flops=5 * n, transcendentals=n,
                           bytes_accessed=2 * n * itemsize)

    extra_kwargs = {}
    if donate_input:
        # Output overwrites x in place (only safe if the caller never reuses x).
        extra_kwargs["input_output_aliases"] = {1: 0}

    out2d = pl.pallas_call(
        functools.partial(_binary_projection_kernel,
                          threshold=float(threshold), compute_dtype=compute_dtype),
        out_shape=jax.ShapeDtypeStruct((rows, lanes), dtype),
        grid=grid,
        in_specs=[
            pl.BlockSpec(memory_space=pltpu.SMEM),                    # scalars
            pl.BlockSpec((block_rows, lanes), lambda i: (i, 0)),      # x tile
        ],
        out_specs=pl.BlockSpec((block_rows, lanes), lambda i: (i, 0)),
        compiler_params=pltpu.CompilerParams(
            dimension_semantics=("parallel",),
            vmem_limit_bytes=_VMEM_LIMIT,
        ),
        cost_estimate=cost,
        **extra_kwargs,
    )(scalars, x2d)

    return out2d.reshape(orig_shape)


def binary_projection_ref(x, t_bny, threshold=0.05):
    """Pure-JAX reference for correctness checking."""
    xf = x.astype(jnp.float32)
    t = jnp.float32(t_bny)
    thr = jnp.float32(threshold)
    num = jnp.tanh(t * thr) + jnp.tanh(t * (xf - thr))
    den = jnp.tanh(t * thr) + jnp.tanh(t * (1.0 - thr))
    return num / den


if __name__ == "__main__":
    key = jax.random.PRNGKey(0)
    t_bny = 10.0          # sharpness of the binarization (runtime scalar)
    threshold = 0.05      # module __init__ default
    k1, k2, k3 = jax.random.split(key, 3)

    # 1) Small NCHW design-density field (2048 elems -> single-block streaming path).
    x_small = jax.random.uniform(k1, (2, 4, 16, 16), dtype=jnp.float32)
    out_small = jax.block_until_ready(binary_projection(x_small, t_bny, threshold))
    ref_small = binary_projection_ref(x_small, t_bny, threshold)
    assert out_small.shape == x_small.shape and out_small.dtype == x_small.dtype
    assert jnp.allclose(out_small, ref_small, atol=1e-5, rtol=1e-5)

    # 2) Larger input exercising the multi-block streaming path (grid >= 4).
    x_wide = jax.random.uniform(k2, (4, 8, 32, 32), dtype=jnp.float32)   # 32768 elems
    out_wide = jax.block_until_ready(binary_projection(x_wide, t_bny, threshold))
    ref_wide = binary_projection_ref(x_wide, t_bny, threshold)
    assert out_wide.shape == x_wide.shape and out_wide.dtype == x_wide.dtype
    assert jnp.allclose(out_wide, ref_wide, atol=1e-5, rtol=1e-5)

    # 3) Ragged input (14700 elems, not a multiple of 128) -> fused jnp fallback.
    x_rag = jax.random.uniform(k3, (1, 3, 70, 70), dtype=jnp.float32)
    out_rag = jax.block_until_ready(binary_projection(x_rag, t_bny, threshold))
    ref_rag = binary_projection_ref(x_rag, t_bny, threshold)
    assert out_rag.shape == x_rag.shape and out_rag.dtype == x_rag.dtype
    assert jnp.allclose(out_rag, ref_rag, atol=1e-5, rtol=1e-5)

    # 4) bf16 input -> bf16-native compute path (looser tolerance vs f32 reference).
    x_bf16 = jax.random.uniform(k1, (2, 8, 32, 32), dtype=jnp.float32).astype(jnp.bfloat16)
    out_bf16 = jax.block_until_ready(binary_projection(x_bf16, t_bny, threshold))
    ref_bf16 = binary_projection_ref(x_bf16, t_bny, threshold)
    assert out_bf16.shape == x_bf16.shape and out_bf16.dtype == jnp.bfloat16
    assert jnp.allclose(out_bf16.astype(jnp.float32), ref_bf16, atol=3e-2, rtol=3e-2)

    print("KERNEL_OK")
</pallas_src>

<mosaic_0001>
module attributes {stable_mosaic.version = 11 : i64} {
  func.func @_binary_projection_kernel(%arg0: i32, %arg1: memref<3xf32, #tpu.memory_space<smem>>, %arg2: memref<2x1024xf32, #tpu.memory_space<vmem>>, %arg3: memref<2x1024xf32, #tpu.memory_space<vmem>>) attributes {dimension_semantics = [#tpu.dimension_semantics<parallel>], iteration_bounds = array<i64: 1>, scalar_prefetch = 0 : i64, scratch_operands = 0 : i64, tpu.core_type = #tpu.core_type<tc>, window_params = [{transform_indices = @transform_0, window_bounds = array<i64: 3>}, {transform_indices = @transform_1, window_bounds = array<i64: 2, 1024>}, {transform_indices = @transform_2, window_bounds = array<i64: 2, 1024>}]} {
    %c0 = arith.constant 0 : index
    %0 = memref.load %arg1[%c0] : memref<3xf32, #tpu.memory_space<smem>>
    %c1 = arith.constant 1 : index
    %1 = memref.load %arg1[%c1] : memref<3xf32, #tpu.memory_space<smem>>
    %c2 = arith.constant 2 : index
    %2 = memref.load %arg1[%c2] : memref<3xf32, #tpu.memory_space<smem>>
    %c0_0 = arith.constant 0 : index
    %c0_1 = arith.constant 0 : index
    %3 = vector.load %arg2[%c0_0, %c0_1] : memref<2x1024xf32, #tpu.memory_space<vmem>>, vector<2x1024xf32>
    %cst = arith.constant 5.000000e-02 : f32
    %4 = vector.broadcast %cst : f32 to vector<2x1024xf32>
    %5 = arith.subf %3, %4 : vector<2x1024xf32>
    %6 = vector.broadcast %0 : f32 to vector<2x1024xf32>
    %7 = arith.mulf %6, %5 : vector<2x1024xf32>
    %8 = math.tanh %7 : vector<2x1024xf32>
    %9 = vector.broadcast %1 : f32 to vector<2x1024xf32>
    %10 = arith.addf %8, %9 : vector<2x1024xf32>
    %11 = vector.broadcast %2 : f32 to vector<2x1024xf32>
    %12 = arith.mulf %10, %11 : vector<2x1024xf32>
    %c0_2 = arith.constant 0 : index
    %c0_3 = arith.constant 0 : index
    %13 = vector.load %arg3[%c0_2, %c0_3] : memref<2x1024xf32, #tpu.memory_space<vmem>>, vector<2x1024xf32>
    tpu.vector_store %arg3[%c0_2, %c0_3], %12 {strides = array<i32>} : memref<2x1024xf32, #tpu.memory_space<vmem>>, vector<2x1024xf32>,
    return
  }
  func.func @transform_0(%arg0: i32) -> i32 {
    %c0_i32 = arith.constant 0 : i32
    %c0_i32_0 = arith.constant 0 : i32
    return %c0_i32 : i32
  }
  func.func @transform_1(%arg0: i32) -> (i32, i32) {
    %c0_i32 = arith.constant 0 : i32
    %c0_i32_0 = arith.constant 0 : i32
    return %arg0, %c0_i32 : i32, i32
  }
  func.func @transform_2(%arg0: i32) -> (i32, i32) {
    %c0_i32 = arith.constant 0 : i32
    %c0_i32_0 = arith.constant 0 : i32
    return %arg0, %c0_i32 : i32, i32
  }
}

</mosaic_0001>

<llo_original>
// kernel: tpu_custom_call.1
$region0: #{tpu_custom_call.1}
  #allocation0 [shape = 'u32[]', space=smem, size = 0x4, offset = 0x4, fixed_abs, tag = 'smem constant byte address 0x4 - core index']
  #allocation1 [shape = 'u32[72,128]{1,0:T(1,128)}', space=vmem, size = 0x9000, scoped, tag = 'internal scratch']
  %s0 = inlined_call_operand.hbm [shape: f32[3], index: 0, kind: input, shape index: {}]
  %s1 = inlined_call_operand.hbm [shape: f32[2,1024], index: 1, kind: input, shape index: {}]
  %s2 = inlined_call_operand.hbm [shape: f32[2,1024], index: 2, kind: output, shape index: {}]
  %s3 = sld [smem:[#allocation0]]
  $region26: #{tpu_custom_call.1} parent=0
    _
  %s5 = ssub.s32 1, %s3
  %s6 = scalar_select 0, %s5, %s3
  $region1: #{tpu_custom_call.1} parent=0
    #allocation2 [shape = 'u8[512]{0}', space=smem, size = 0x200, scoped, tag = 'input window, operand 0, single buffered']
    #allocation3 [shape = 's32[1]{0}', space=sflag, size = 0x4, scoped, tag = 'scoped memory for tpu_custom_call.1']
    #allocation4 [shape = 's32[1]{0}', space=sflag, size = 0x4, scoped, tag = 'scoped memory for tpu_custom_call.1']
    #allocation5 [shape = 's32[1]{0}', space=sflag, size = 0x4, scoped, tag = 'scoped memory for tpu_custom_call.1']
    #allocation6 [shape = 'u8[8192]{0}', space=vmem, size = 0x2000, scoped, tag = 'input window, operand 1, single buffered']
    #allocation7 [shape = 'u8[8192]{0}', space=vmem, size = 0x2000, scoped, tag = 'output window, operand 0, single buffered']
    %7 = vsyncpa [#allocation5], 0
    %8 = vsyncpa [#allocation3], 0
    %9 = vsyncpa [#allocation4], 0
    // Predicated region
    $region2: #{tpu_custom_call.1} parent=1 // pred_check
      _
    $region3: #{tpu_custom_call.1} parent=1 // pred_check_branch
      %11 = sbr.rel (0) target = $region5
    $region4: #{tpu_custom_call.1} parent=1 // pred_region
      %13 = vsyncadd [#allocation5], 0
      %s15 = sshll.u32 %s0, 4
      %s16 = int_to_ptr.hbm [resolvable:$true] %s15
      %18 = dma.hbm_to_smem %s16, 16, [#allocation2], [#allocation5]
    $region5: #{tpu_custom_call.1} parent=1 // pred_fallthru
      _
    // Predicated region
    $region6: #{tpu_custom_call.1} parent=1 // pred_check
      _
    $region7: #{tpu_custom_call.1} parent=1 // pred_check_branch
      %20 = sbr.rel (0) target = $region9
    $region8: #{tpu_custom_call.1} parent=1 // pred_region
      %22 = vsyncadd [#allocation3], 0
      %s24 = sshll.u32 %s1, 4
      %s25 = int_to_ptr.hbm [resolvable:$true] %s24
      %s26 = sshll.u32 [#allocation6], 4
      %s27 = int_to_ptr.vmem [resolvable:$true] %s26
      %29 = dma.hbm_to_vmem [thread:$0]  %s25, 256, %s27, [#allocation3]
    $region9: #{tpu_custom_call.1} parent=1 // pred_fallthru
      _
    // Predicated region
    $region10: #{tpu_custom_call.1} parent=1 // pred_check
      _
    $region11: #{tpu_custom_call.1} parent=1 // pred_check_branch
      %31 = sbr.rel (0) target = $region13
    $region12: #{tpu_custom_call.1} parent=1 // pred_region
      %33 = dma.done [#allocation5], 16
    $region13: #{tpu_custom_call.1} parent=1 // pred_fallthru
      _
    // Predicated region
    $region14: #{tpu_custom_call.1} parent=1 // pred_check
      _
    $region15: #{tpu_custom_call.1} parent=1 // pred_check_branch
      %35 = sbr.rel (0) target = $region17
    $region16: #{tpu_custom_call.1} parent=1 // pred_region
      %37 = dma.done [#allocation3], 256
    $region17: #{tpu_custom_call.1} parent=1 // pred_fallthru
      _
    %38 = sfence
    %s39 = sld [smem:[#allocation2]]
    %s40 = sld [smem:[#allocation2 + $0x1]]
    %s41 = sld [smem:[#allocation2 + $0x2]]
    %v42 = vld [vmem:[#allocation6] sm:$0xff]
    %v43 = vld [vmem:[#allocation6 + $0x8] sm:$0xff]
    %v44 = vsub.f32 %v42, 0.05
    %v45 = vsub.f32 %v43, 0.05
    %v46 = vstv %s39
    %v47 = vmul.f32 %v46, %v44
    %v48 = vmul.f32 %v46, %v45
    %v49 = vtanh.pop %v47
    %v50 = vtanh.pop %v48
    %v51 = vstv %s40
    %v52 = vadd.f32 %v49, %v51
    %v53 = vadd.f32 %v50, %v51
    %v54 = vstv %s41
    %v55 = vmul.f32 %v52, %v54
    %v56 = vmul.f32 %v53, %v54
    %57 = vst [vmem:[#allocation7] sm:$0xff] %v55
    %58 = vst [vmem:[#allocation7 + $0x8] sm:$0xff] %v56
    // Predicated region
    $region18: #{tpu_custom_call.1} parent=1 // pred_check
      _
    $region19: #{tpu_custom_call.1} parent=1 // pred_check_branch
      %60 = sbr.rel (0) target = $region21
    $region20: #{tpu_custom_call.1} parent=1 // pred_region
      %62 = vsyncadd [#allocation4], 0
      %s64 = sshll.u32 [#allocation7], 4
      %s65 = int_to_ptr.vmem [resolvable:$true] %s64
      %s66 = sshll.u32 %s2, 4
      %s67 = int_to_ptr.hbm [resolvable:$true] %s66
      %69 = dma.vmem_to_hbm [thread:$0]  %s65, 256, %s67, [#allocation4]
    $region21: #{tpu_custom_call.1} parent=1 // pred_fallthru
      _
    // Predicated region
    $region22: #{tpu_custom_call.1} parent=1 // pred_check
      _
    $region23: #{tpu_custom_call.1} parent=1 // pred_check_branch
      %71 = sbr.rel (0) target = $region25
    $region24: #{tpu_custom_call.1} parent=1 // pred_region
      %73 = dma.done [#allocation4], 256
    $region25: #{tpu_custom_call.1} parent=1 // pred_fallthru
      _
    %74 = vsyncpa [#allocation3], 1
    %75 = vsyncpa [#allocation4], 1
    %76 = vsyncpa [#allocation5], 1

</llo_original>
